<compile_context>
chip_gen: v7x
topology: tpu7x:2x2x1
jax: 0.10.0
libtpu: 0.0.40
codegen_flags: <defaults>
</compile_context>

<pallas_src>
import math

import jax
import jax.numpy as jnp
from jax.experimental import pallas as pl
from jax.experimental.pallas import tpu as pltpu

# ----------------------------- config (args) ---------------------------------
BATCH = 2
SEQ = 8
HIDDEN = 32
N_HEADS = 4
HEAD_DIM = HIDDEN // N_HEADS
# args.hidden_dropout_prob: dropout is identity in eval/inference mode.
# TODO(synk): training-mode dropout on attention probs not implemented (identity here).
# TODO(synk): the PyTorch module also stashes `self.scores`; not returned here.


# ------------------------------- kernel --------------------------------------
def mhsa_kernel(x_ref, mask_ref, wqkv_ref, bqkv_ref, o_ref):
    # Per grid step (one batch element):
    #   x_ref:    (1, S, H)  bf16
    #   mask_ref: (1, 1, S)  f32
    #   wqkv_ref: (H, 3H)    bf16   (resident: constant index_map)
    #   bqkv_ref: (1, 3H)    f32    (resident)
    #   o_ref:    (1, S, H)  f32
    # Fused Q/K/V projection: one bf16 MXU matmul, f32 accumulation, f32 bias.
    qkv = (jnp.dot(x_ref[0], wqkv_ref[...], preferred_element_type=jnp.float32)
           + bqkv_ref[...])                                    # (S, 3H) f32
    qkv_bf = qkv.astype(jnp.bfloat16)                          # MXU operands

    inv_scale = jnp.float32(1.0 / math.sqrt(HEAD_DIM))
    # Additive key mask (hoisted out of the head loop): -10000 * (1 - mask).
    neg = 10000.0 * (1.0 - mask_ref[0])                        # (1, S)

    head_outs = []
    for h in range(N_HEADS):        # static unroll; N_HEADS is tiny
        c = h * HEAD_DIM
        # Contiguous per-head slices -> exact per-head MXU flops.
        q_h = qkv_bf[:, c:c + HEAD_DIM]                                  # (S, D)
        k_h = qkv_bf[:, HIDDEN + c:HIDDEN + c + HEAD_DIM]                # (S, D)
        v_h = qkv_bf[:, 2 * HIDDEN + c:2 * HIDDEN + c + HEAD_DIM]        # (S, D)

        s = jnp.einsum('qd,kd->qk', q_h, k_h,
                       preferred_element_type=jnp.float32) * inv_scale - neg
        # Numerically-stable softmax over keys, f32 (matches F.softmax).
        s_max = jnp.max(s, axis=-1, keepdims=True)
        e = jnp.exp(s - s_max)
        p = e * pl.reciprocal(jnp.sum(e, axis=-1, keepdims=True), approx=True)

        # PV on the MXU with bf16 operands, f32 accumulation.
        head_outs.append(jnp.dot(p.astype(jnp.bfloat16), v_h,
                                 preferred_element_type=jnp.float32))    # (S, D)

    # merge_last: single lane concat of the heads, one dense store per block.
    o_ref[0] = jnp.concatenate(head_outs, axis=-1).astype(o_ref.dtype)


# ------------------------------- wrapper --------------------------------------
def fuse_qkv_params(wq, bq, wk, bk, wv, bv):
    """Pre-transpose + fuse the three nn.Linear projections ONCE (cache/reuse)."""
    # nn.Linear does x @ W.T + b; fuse to a single (H, 3H) bf16 weight.
    wqkv = jnp.concatenate([wq.T, wk.T, wv.T], axis=1).astype(jnp.bfloat16)  # (H, 3H)
    bqkv = jnp.concatenate([bq, bk, bv]).reshape(1, -1).astype(jnp.float32)  # (1, 3H)
    return wqkv, bqkv


@jax.jit
def multi_headed_self_attention(x, mask, wqkv, bqkv):
    B, S, H = x.shape
    x_bf = x.astype(jnp.bfloat16)                    # halve activation DMA bytes
    mask3 = mask.astype(jnp.float32).reshape(B, 1, S)

    return pl.pallas_call(
        mhsa_kernel,
        out_shape=jax.ShapeDtypeStruct((B, S, H), x.dtype),
        grid=(B,),                                   # one step per batch element
        in_specs=[
            pl.BlockSpec((1, S, H), lambda b: (b, 0, 0)),     # x (bf16)
            pl.BlockSpec((1, 1, S), lambda b: (b, 0, 0)),     # mask
            pl.BlockSpec((H, 3 * H), lambda b: (0, 0)),       # fused W_qkv, resident
            pl.BlockSpec((1, 3 * H), lambda b: (0, 0)),       # fused b_qkv, resident
        ],
        out_specs=pl.BlockSpec((1, S, H), lambda b: (b, 0, 0)),
        compiler_params=pltpu.CompilerParams(
            dimension_semantics=("parallel",)),      # v7x megacore; serial on v5e/v6e
        # TODO(synk): at production sizes set vmem_limit_bytes here (v7x: 64 MiB).
    )(x_bf, mask3, wqkv, bqkv)


# ---------------------------- pure-JAX reference -------------------------------
def reference(x, mask, wq, bq, wk, bk, wv, bv):
    B, S, H = x.shape
    q = x @ wq.T + bq
    k = x @ wk.T + bk
    v = x @ wv.T + bv

    def split(t):
        return jnp.transpose(t.reshape(B, S, N_HEADS, HEAD_DIM), (0, 2, 1, 3))

    q, k, v = split(q), split(k), split(v)
    scores = jnp.einsum("bhqd,bhkd->bhqk", q, k) / jnp.sqrt(jnp.float32(HEAD_DIM))
    m = mask[:, None, None, :].astype(jnp.float32)
    scores = scores - 10000.0 * (1.0 - m)
    p = jax.nn.softmax(scores, axis=-1)
    h = jnp.einsum("bhqk,bhkd->bhqd", p, v)
    h = jnp.transpose(h, (0, 2, 1, 3)).reshape(B, S, H)
    return h


# --------------------------------- main ----------------------------------------
if __name__ == "__main__":
    key = jax.random.PRNGKey(0)
    kx, kq, kbq, kk, kbk, kv, kbv = jax.random.split(key, 7)

    x = jax.random.normal(kx, (BATCH, SEQ, HIDDEN), dtype=jnp.float32)

    # Deterministic parameter init (nn.Linear shapes: W (out,in), b (out,)).
    bound = 1.0 / math.sqrt(HIDDEN)
    wq = jax.random.uniform(kq, (HIDDEN, HIDDEN), jnp.float32, -bound, bound)
    bq = jax.random.uniform(kbq, (HIDDEN,), jnp.float32, -bound, bound)
    wk = jax.random.uniform(kk, (HIDDEN, HIDDEN), jnp.float32, -bound, bound)
    bk = jax.random.uniform(kbk, (HIDDEN,), jnp.float32, -bound, bound)
    wv = jax.random.uniform(kv, (HIDDEN, HIDDEN), jnp.float32, -bound, bound)
    bv = jax.random.uniform(kbv, (HIDDEN,), jnp.float32, -bound, bound)

    # binary attention mask: 1 = attend, 0 = masked (last 2 keys masked in batch 1)
    mask = jnp.ones((BATCH, SEQ), dtype=jnp.float32)
    mask = mask.at[1, -2:].set(0.0)

    # Fuse the projection weights ONCE (would be cached/reused across calls).
    wqkv, bqkv = fuse_qkv_params(wq, bq, wk, bk, wv, bv)

    out = multi_headed_self_attention(x, mask, wqkv, bqkv)
    out = jax.block_until_ready(out)

    ref = reference(x, mask, wq, bq, wk, bk, wv, bv)
    assert out.shape == (BATCH, SEQ, HIDDEN)
    # Tolerance covers bf16 MXU operands (f32 accumulation) + EUP approx reciprocal.
    assert jnp.allclose(out, ref, atol=3e-2, rtol=3e-2), "mismatch vs reference"

    print("KERNEL_OK")
</pallas_src>

<mosaic_0001>
module attributes {stable_mosaic.version = 11 : i64} {
  func.func @mhsa_kernel(%arg0: i32, %arg1: memref<1x8x32xbf16, #tpu.memory_space<vmem>>, %arg2: memref<1x1x8xf32, #tpu.memory_space<vmem>>, %arg3: memref<32x96xbf16, #tpu.memory_space<vmem>>, %arg4: memref<1x96xf32, #tpu.memory_space<vmem>>, %arg5: memref<1x8x32xf32, #tpu.memory_space<vmem>>) attributes {dimension_semantics = [#tpu.dimension_semantics<parallel>], iteration_bounds = array<i64: 2>, scalar_prefetch = 0 : i64, scratch_operands = 0 : i64, tpu.core_type = #tpu.core_type<tc>, window_params = [{transform_indices = @transform_0, window_bounds = array<i64: 1, 8, 32>}, {transform_indices = @transform_1, window_bounds = array<i64: 1, 1, 8>}, {pipeline_mode = #tpu.pipeline_mode<synchronous>, transform_indices = @transform_2, window_bounds = array<i64: 32, 96>}, {pipeline_mode = #tpu.pipeline_mode<synchronous>, transform_indices = @transform_3, window_bounds = array<i64: 1, 96>}, {transform_indices = @transform_4, window_bounds = array<i64: 1, 8, 32>}]} {
    %c0 = arith.constant 0 : index
    %c0_0 = arith.constant 0 : index
    %c0_1 = arith.constant 0 : index
    %0 = vector.load %arg1[%c0, %c0_0, %c0_1] : memref<1x8x32xbf16, #tpu.memory_space<vmem>>, vector<1x8x32xbf16>
    %1 = vector.shape_cast %0 : vector<1x8x32xbf16> to vector<8x32xbf16>
    %c0_2 = arith.constant 0 : index
    %c0_3 = arith.constant 0 : index
    %2 = vector.load %arg3[%c0_2, %c0_3] : memref<32x96xbf16, #tpu.memory_space<vmem>>, vector<32x96xbf16>
    %cst = arith.constant dense<0.000000e+00> : vector<8x96xf32>
    %3 = tpu.matmul %1, %2, %cst {dimension_numbers = #tpu.dot_dimension_numbers<[1], [0], [0], [1], [0, 0, 1, 1], [], []>} : vector<8x32xbf16>, vector<32x96xbf16>, vector<8x96xf32> -> vector<8x96xf32>
    %c0_4 = arith.constant 0 : index
    %c0_5 = arith.constant 0 : index
    %4 = vector.load %arg4[%c0_4, %c0_5] : memref<1x96xf32, #tpu.memory_space<vmem>>, vector<1x96xf32>
    %5 = vector.broadcast %4 : vector<1x96xf32> to vector<8x96xf32>
    %6 = arith.addf %3, %5 : vector<8x96xf32>
    %7 = arith.truncf %6 : vector<8x96xf32> to vector<8x96xbf16>
    %c0_6 = arith.constant 0 : index
    %c0_7 = arith.constant 0 : index
    %c0_8 = arith.constant 0 : index
    %8 = vector.load %arg2[%c0_6, %c0_7, %c0_8] : memref<1x1x8xf32, #tpu.memory_space<vmem>>, vector<1x1x8xf32>
    %9 = vector.shape_cast %8 : vector<1x1x8xf32> to vector<1x8xf32>
    %cst_9 = arith.constant 1.000000e+00 : f32
    %10 = vector.broadcast %cst_9 : f32 to vector<1x8xf32>
    %11 = arith.subf %10, %9 : vector<1x8xf32>
    %cst_10 = arith.constant 1.000000e+04 : f32
    %12 = vector.broadcast %cst_10 : f32 to vector<1x8xf32>
    %13 = arith.mulf %12, %11 : vector<1x8xf32>
    %14 = vector.extract_strided_slice %7 {offsets = [0, 0], sizes = [8, 8], strides = [1, 1]} : vector<8x96xbf16> to vector<8x8xbf16>
    %15 = vector.extract_strided_slice %7 {offsets = [0, 32], sizes = [8, 8], strides = [1, 1]} : vector<8x96xbf16> to vector<8x8xbf16>
    %16 = vector.extract_strided_slice %7 {offsets = [0, 64], sizes = [8, 8], strides = [1, 1]} : vector<8x96xbf16> to vector<8x8xbf16>
    "tpu.trace_start"() <{level = 10 : i32, message = "qd,kd->qk"}> : () -> ()
    %cst_11 = arith.constant dense<0.000000e+00> : vector<8x8xf32>
    %17 = tpu.matmul %14, %15, %cst_11 {dimension_numbers = #tpu.dot_dimension_numbers<[1], [1], [0], [0], [0, 0, 1, 0], [], []>} : vector<8x8xbf16>, vector<8x8xbf16>, vector<8x8xf32> -> vector<8x8xf32>
    "tpu.trace_stop"() : () -> ()
    %cst_12 = arith.constant 0.353553385 : f32
    %18 = vector.broadcast %cst_12 : f32 to vector<8x8xf32>
    %19 = arith.mulf %17, %18 : vector<8x8xf32>
    %20 = vector.broadcast %13 : vector<1x8xf32> to vector<8x8xf32>
    %21 = arith.subf %19, %20 : vector<8x8xf32>
    %cst_13 = arith.constant dense<0xFF800000> : vector<8xf32>
    %22 = vector.multi_reduction <maximumf>, %21, %cst_13 [1] : vector<8x8xf32> to vector<8xf32>
    %23 = vector.shape_cast %22 : vector<8xf32> to vector<8x1xf32>
    %24 = vector.broadcast %23 : vector<8x1xf32> to vector<8x8xf32>
    %25 = arith.subf %21, %24 : vector<8x8xf32>
    %26 = math.exp %25 : vector<8x8xf32>
    %cst_14 = arith.constant dense<0.000000e+00> : vector<8xf32>
    %27 = vector.multi_reduction <add>, %26, %cst_14 [1] : vector<8x8xf32> to vector<8xf32>
    %28 = vector.shape_cast %27 : vector<8xf32> to vector<8x1xf32>
    %29 = tpu.reciprocal %28 {approx = true} : vector<8x1xf32> -> vector<8x1xf32>
    %30 = vector.broadcast %29 : vector<8x1xf32> to vector<8x8xf32>
    %31 = arith.mulf %26, %30 : vector<8x8xf32>
    %32 = arith.truncf %31 : vector<8x8xf32> to vector<8x8xbf16>
    %cst_15 = arith.constant dense<0.000000e+00> : vector<8x8xf32>
    %33 = tpu.matmul %32, %16, %cst_15 {dimension_numbers = #tpu.dot_dimension_numbers<[1], [0], [0], [1], [0, 0, 1, 1], [], []>} : vector<8x8xbf16>, vector<8x8xbf16>, vector<8x8xf32> -> vector<8x8xf32>
    %34 = vector.extract_strided_slice %7 {offsets = [0, 8], sizes = [8, 8], strides = [1, 1]} : vector<8x96xbf16> to vector<8x8xbf16>
    %35 = vector.extract_strided_slice %7 {offsets = [0, 40], sizes = [8, 8], strides = [1, 1]} : vector<8x96xbf16> to vector<8x8xbf16>
    %36 = vector.extract_strided_slice %7 {offsets = [0, 72], sizes = [8, 8], strides = [1, 1]} : vector<8x96xbf16> to vector<8x8xbf16>
    "tpu.trace_start"() <{level = 10 : i32, message = "qd,kd->qk"}> : () -> ()
    %cst_16 = arith.constant dense<0.000000e+00> : vector<8x8xf32>
    %37 = tpu.matmul %34, %35, %cst_16 {dimension_numbers = #tpu.dot_dimension_numbers<[1], [1], [0], [0], [0, 0, 1, 0], [], []>} : vector<8x8xbf16>, vector<8x8xbf16>, vector<8x8xf32> -> vector<8x8xf32>
    "tpu.trace_stop"() : () -> ()
    %cst_17 = arith.constant 0.353553385 : f32
    %38 = vector.broadcast %cst_17 : f32 to vector<8x8xf32>
    %39 = arith.mulf %37, %38 : vector<8x8xf32>
    %40 = vector.broadcast %13 : vector<1x8xf32> to vector<8x8xf32>
    %41 = arith.subf %39, %40 : vector<8x8xf32>
    %cst_18 = arith.constant dense<0xFF800000> : vector<8xf32>
    %42 = vector.multi_reduction <maximumf>, %41, %cst_18 [1] : vector<8x8xf32> to vector<8xf32>
    %43 = vector.shape_cast %42 : vector<8xf32> to vector<8x1xf32>
    %44 = vector.broadcast %43 : vector<8x1xf32> to vector<8x8xf32>
    %45 = arith.subf %41, %44 : vector<8x8xf32>
    %46 = math.exp %45 : vector<8x8xf32>
    %cst_19 = arith.constant dense<0.000000e+00> : vector<8xf32>
    %47 = vector.multi_reduction <add>, %46, %cst_19 [1] : vector<8x8xf32> to vector<8xf32>
    %48 = vector.shape_cast %47 : vector<8xf32> to vector<8x1xf32>
    %49 = tpu.reciprocal %48 {approx = true} : vector<8x1xf32> -> vector<8x1xf32>
    %50 = vector.broadcast %49 : vector<8x1xf32> to vector<8x8xf32>
    %51 = arith.mulf %46, %50 : vector<8x8xf32>
    %52 = arith.truncf %51 : vector<8x8xf32> to vector<8x8xbf16>
    %cst_20 = arith.constant dense<0.000000e+00> : vector<8x8xf32>
    %53 = tpu.matmul %52, %36, %cst_20 {dimension_numbers = #tpu.dot_dimension_numbers<[1], [0], [0], [1], [0, 0, 1, 1], [], []>} : vector<8x8xbf16>, vector<8x8xbf16>, vector<8x8xf32> -> vector<8x8xf32>
    %54 = vector.extract_strided_slice %7 {offsets = [0, 16], sizes = [8, 8], strides = [1, 1]} : vector<8x96xbf16> to vector<8x8xbf16>
    %55 = vector.extract_strided_slice %7 {offsets = [0, 48], sizes = [8, 8], strides = [1, 1]} : vector<8x96xbf16> to vector<8x8xbf16>
    %56 = vector.extract_strided_slice %7 {offsets = [0, 80], sizes = [8, 8], strides = [1, 1]} : vector<8x96xbf16> to vector<8x8xbf16>
    "tpu.trace_start"() <{level = 10 : i32, message = "qd,kd->qk"}> : () -> ()
    %cst_21 = arith.constant dense<0.000000e+00> : vector<8x8xf32>
    %57 = tpu.matmul %54, %55, %cst_21 {dimension_numbers = #tpu.dot_dimension_numbers<[1], [1], [0], [0], [0, 0, 1, 0], [], []>} : vector<8x8xbf16>, vector<8x8xbf16>, vector<8x8xf32> -> vector<8x8xf32>
    "tpu.trace_stop"() : () -> ()
    %cst_22 = arith.constant 0.353553385 : f32
    %58 = vector.broadcast %cst_22 : f32 to vector<8x8xf32>
    %59 = arith.mulf %57, %58 : vector<8x8xf32>
    %60 = vector.broadcast %13 : vector<1x8xf32> to vector<8x8xf32>
    %61 = arith.subf %59, %60 : vector<8x8xf32>
    %cst_23 = arith.constant dense<0xFF800000> : vector<8xf32>
    %62 = vector.multi_reduction <maximumf>, %61, %cst_23 [1] : vector<8x8xf32> to vector<8xf32>
    %63 = vector.shape_cast %62 : vector<8xf32> to vector<8x1xf32>
    %64 = vector.broadcast %63 : vector<8x1xf32> to vector<8x8xf32>
    %65 = arith.subf %61, %64 : vector<8x8xf32>
    %66 = math.exp %65 : vector<8x8xf32>
    %cst_24 = arith.constant dense<0.000000e+00> : vector<8xf32>
    %67 = vector.multi_reduction <add>, %66, %cst_24 [1] : vector<8x8xf32> to vector<8xf32>
    %68 = vector.shape_cast %67 : vector<8xf32> to vector<8x1xf32>
    %69 = tpu.reciprocal %68 {approx = true} : vector<8x1xf32> -> vector<8x1xf32>
    %70 = vector.broadcast %69 : vector<8x1xf32> to vector<8x8xf32>
    %71 = arith.mulf %66, %70 : vector<8x8xf32>
    %72 = arith.truncf %71 : vector<8x8xf32> to vector<8x8xbf16>
    %cst_25 = arith.constant dense<0.000000e+00> : vector<8x8xf32>
    %73 = tpu.matmul %72, %56, %cst_25 {dimension_numbers = #tpu.dot_dimension_numbers<[1], [0], [0], [1], [0, 0, 1, 1], [], []>} : vector<8x8xbf16>, vector<8x8xbf16>, vector<8x8xf32> -> vector<8x8xf32>
    %74 = vector.extract_strided_slice %7 {offsets = [0, 24], sizes = [8, 8], strides = [1, 1]} : vector<8x96xbf16> to vector<8x8xbf16>
    %75 = vector.extract_strided_slice %7 {offsets = [0, 56], sizes = [8, 8], strides = [1, 1]} : vector<8x96xbf16> to vector<8x8xbf16>
    %76 = vector.extract_strided_slice %7 {offsets = [0, 88], sizes = [8, 8], strides = [1, 1]} : vector<8x96xbf16> to vector<8x8xbf16>
    "tpu.trace_start"() <{level = 10 : i32, message = "qd,kd->qk"}> : () -> ()
    %cst_26 = arith.constant dense<0.000000e+00> : vector<8x8xf32>
    %77 = tpu.matmul %74, %75, %cst_26 {dimension_numbers = #tpu.dot_dimension_numbers<[1], [1], [0], [0], [0, 0, 1, 0], [], []>} : vector<8x8xbf16>, vector<8x8xbf16>, vector<8x8xf32> -> vector<8x8xf32>
    "tpu.trace_stop"() : () -> ()
    %cst_27 = arith.constant 0.353553385 : f32
    %78 = vector.broadcast %cst_27 : f32 to vector<8x8xf32>
    %79 = arith.mulf %77, %78 : vector<8x8xf32>
    %80 = vector.broadcast %13 : vector<1x8xf32> to vector<8x8xf32>
    %81 = arith.subf %79, %80 : vector<8x8xf32>
    %cst_28 = arith.constant dense<0xFF800000> : vector<8xf32>
    %82 = vector.multi_reduction <maximumf>, %81, %cst_28 [1] : vector<8x8xf32> to vector<8xf32>
    %83 = vector.shape_cast %82 : vector<8xf32> to vector<8x1xf32>
    %84 = vector.broadcast %83 : vector<8x1xf32> to vector<8x8xf32>
    %85 = arith.subf %81, %84 : vector<8x8xf32>
    %86 = math.exp %85 : vector<8x8xf32>
    %cst_29 = arith.constant dense<0.000000e+00> : vector<8xf32>
    %87 = vector.multi_reduction <add>, %86, %cst_29 [1] : vector<8x8xf32> to vector<8xf32>
    %88 = vector.shape_cast %87 : vector<8xf32> to vector<8x1xf32>
    %89 = tpu.reciprocal %88 {approx = true} : vector<8x1xf32> -> vector<8x1xf32>
    %90 = vector.broadcast %89 : vector<8x1xf32> to vector<8x8xf32>
    %91 = arith.mulf %86, %90 : vector<8x8xf32>
    %92 = arith.truncf %91 : vector<8x8xf32> to vector<8x8xbf16>
    %cst_30 = arith.constant dense<0.000000e+00> : vector<8x8xf32>
    %93 = tpu.matmul %92, %76, %cst_30 {dimension_numbers = #tpu.dot_dimension_numbers<[1], [0], [0], [1], [0, 0, 1, 1], [], []>} : vector<8x8xbf16>, vector<8x8xbf16>, vector<8x8xf32> -> vector<8x8xf32>
    %94 = tpu.concatenate %33, %53, %73, %93 in 1 : vector<8x8xf32>, vector<8x8xf32>, vector<8x8xf32>, vector<8x8xf32> -> vector<8x32xf32>
    %c0_31 = arith.constant 0 : index
    %c0_32 = arith.constant 0 : index
    %c0_33 = arith.constant 0 : index
    %95 = vector.load %arg5[%c0_31, %c0_32, %c0_33] : memref<1x8x32xf32, #tpu.memory_space<vmem>>, vector<1x8x32xf32>
    %96 = vector.shape_cast %95 : vector<1x8x32xf32> to vector<8x32xf32>
    %97 = vector.shape_cast %94 : vector<8x32xf32> to vector<1x8x32xf32>
    tpu.vector_store %arg5[%c0_31, %c0_32, %c0_33], %97 {strides = array<i32>} : memref<1x8x32xf32, #tpu.memory_space<vmem>>, vector<1x8x32xf32>,
    return
  }
  func.func @transform_0(%arg0: i32) -> (i32, i32, i32) {
    %c0_i32 = arith.constant 0 : i32
    %c0_i32_0 = arith.constant 0 : i32
    %c0_i32_1 = arith.constant 0 : i32
    return %arg0, %c0_i32, %c0_i32_0 : i32, i32, i32
  }
  func.func @transform_1(%arg0: i32) -> (i32, i32, i32) {
    %c0_i32 = arith.constant 0 : i32
    %c0_i32_0 = arith.constant 0 : i32
    %c0_i32_1 = arith.constant 0 : i32
    return %arg0, %c0_i32, %c0_i32_0 : i32, i32, i32
  }
  func.func @transform_2(%arg0: i32) -> (i32, i32) {
    %c0_i32 = arith.constant 0 : i32
    %c0_i32_0 = arith.constant 0 : i32
    %c0_i32_1 = arith.constant 0 : i32
    return %c0_i32, %c0_i32_0 : i32, i32
  }
  func.func @transform_3(%arg0: i32) -> (i32, i32) {
    %c0_i32 = arith.constant 0 : i32
    %c0_i32_0 = arith.constant 0 : i32
    %c0_i32_1 = arith.constant 0 : i32
    return %c0_i32, %c0_i32_0 : i32, i32
  }
  func.func @transform_4(%arg0: i32) -> (i32, i32, i32) {
    %c0_i32 = arith.constant 0 : i32
    %c0_i32_0 = arith.constant 0 : i32
    %c0_i32_1 = arith.constant 0 : i32
    return %arg0, %c0_i32, %c0_i32_0 : i32, i32, i32
  }
}

</mosaic_0001>

<llo_original>
// kernel: multi_headed_self_attention.1
$region0: #{multi_headed_self_attention.1}
  #allocation0 [shape = 'u32[]', space=smem, size = 0x4, offset = 0x4, fixed_abs, tag = 'smem constant byte address 0x4 - core index']
  #allocation1 [shape = 'u32[144,128]{1,0:T(1,128)}', space=vmem, size = 0x12000, scoped, tag = 'internal scratch']
  %s0 = inlined_call_operand.vmem [shape: bf16[2,8,32], index: 0, kind: input, shape index: {}]
  %s1 = inlined_call_operand.vmem [shape: f32[2,1,8], index: 1, kind: input, shape index: {}]
  %s2 = inlined_call_operand.vmem [shape: bf16[32,96], index: 2, kind: input, shape index: {}]
  %s3 = inlined_call_operand.vmem [shape: f32[1,96], index: 3, kind: input, shape index: {}]
  %s4 = inlined_call_operand.hbm [shape: f32[2,8,32], index: 4, kind: output, shape index: {}]
  %s5 = sld [smem:[#allocation0]]
  $region49: #{multi_headed_self_attention.1} parent=0
    _
  %s7 = ssub.s32 1, %s5
  %s8 = scalar_select 0, %s7, %s5
  $region1: #{multi_headed_self_attention.1} parent=0
    #allocation2 [shape = 'u8[8192]{0}', space=vmem, size = 0x2000, scoped, tag = 'output window, operand 0']
    #allocation3 [shape = 's32[2]{0}', space=sflag, size = 0x8, scoped, tag = 'scoped memory for multi_headed_self_attention.1']
    %9 = vsyncpa [#allocation3], 0
    %s10 = scalar_lea.sflag [#allocation3], 1
    %11 = vsyncpa %s10, 0
    loop: start=0, step=1, limit=4
    $region2: #{multi_headed_self_attention.1} parent=1 // loop_pre_header
      _
    $region3: #{multi_headed_self_attention.1} parent=1 // loop_header
      %s13 = sphi 0, %s17
      %p14 = scmp.ge.s32.totalorder %s13, 4
      %s23 = sphi 0, %s25
      %s26 = sphi 0, %s23
      %s27 = sphi 0, %s26
      %s43 = sphi 0, %s27
      %s49 = sphi 0, %s51
      %s52 = sphi 0, %s49
      %s53 = sphi 0, %s52
      %s69 = sphi 0, %s53
      %s73 = sphi 0, %s73
      %s75 = sphi 0, %s73
      %s76 = sphi 0, %s75
      %s90 = sphi 0, %s76
      %s94 = sphi 0, %s94
      %s96 = sphi 0, %s94
      %s97 = sphi 0, %s96
      %s111 = sphi 0, %s97
      %s117 = sphi 0, %s119
      %s120 = sphi 0, %s117
      %s121 = sphi 0, %s120
      %s137 = sphi 0, %s121
    $region4: #{multi_headed_self_attention.1} parent=1 // loop_header_branch
      %16 = sbr.rel (%p14) target = $region8
    $region5: #{multi_headed_self_attention.1} parent=1 // loop_body
      %s18 = ssub.s32 %s13, 1
      %s19 = ssub.s32 %s13, 2
      %s20 = sadd.s32 %s13, 1
      %s21 = ssub.s32 %s13, %s20
      %p22 = scmp.eq.s32.totalorder %s21, 0
      %s24 = sadd.s32 %s23, 1
      %s25 = scalar_select %p22, %s23, %s24
      %p28 = pneg %p22
      %p29 = scmp.eq.s32.totalorder %s13, 1
      %p30 = por %p28, %p29
      %p31 = scmp.ne.s32.totalorder %s23, %s26
      %p32 = scmp.eq.s32.totalorder %s13, 0
      %p33 = por %p31, %p32
      %p34 = scmp.ne.s32.totalorder %s23, %s26
      %p35 = scmp.eq.s32.totalorder %s18, 1
      %p36 = por %p34, %p35
      %p37 = scmp.ne.s32.totalorder %s26, %s27
      %p38 = scmp.eq.s32.totalorder %s18, 0
      %p39 = por %p37, %p38
      %p40 = scmp.ne.s32.totalorder %s26, %s27
      %p41 = scmp.eq.s32.totalorder %s19, 1
      %p42 = por %p40, %p41
      %p44 = scmp.ne.s32.totalorder %s27, %s43
      %p45 = scmp.eq.s32.totalorder %s19, 0
      %p46 = por %p44, %p45
      %s47 = ssub.s32 %s13, %s20
      %p48 = scmp.eq.s32.totalorder %s47, 0
      %s50 = sadd.s32 %s49, 1
      %s51 = scalar_select %p48, %s49, %s50
      %p54 = pneg %p48
      %p55 = scmp.eq.s32.totalorder %s13, 1
      %p56 = por %p54, %p55
      %p57 = scmp.ne.s32.totalorder %s49, %s52
      %p58 = scmp.eq.s32.totalorder %s13, 0
      %p59 = por %p57, %p58
      %p60 = scmp.ne.s32.totalorder %s49, %s52
      %p61 = scmp.eq.s32.totalorder %s18, 1
      %p62 = por %p60, %p61
      %p63 = scmp.ne.s32.totalorder %s52, %s53
      %p64 = scmp.eq.s32.totalorder %s18, 0
      %p65 = por %p63, %p64
      %p66 = scmp.ne.s32.totalorder %s52, %s53
      %p67 = scmp.eq.s32.totalorder %s19, 1
      %p68 = por %p66, %p67
      %p70 = scmp.ne.s32.totalorder %s53, %s69
      %p71 = scmp.eq.s32.totalorder %s19, 0
      %p72 = por %p70, %p71
      %s74 = sadd.s32 %s73, 1
      %p77 = scmp.eq.s32.totalorder %s13, 1
      %p78 = scmp.ne.s32.totalorder %s73, %s75
      %p79 = scmp.eq.s32.totalorder %s13, 0
      %p80 = por %p78, %p79
      %p81 = scmp.ne.s32.totalorder %s73, %s75
      %p82 = scmp.eq.s32.totalorder %s18, 1
      %p83 = por %p81, %p82
      %p84 = scmp.ne.s32.totalorder %s75, %s76
      %p85 = scmp.eq.s32.totalorder %s18, 0
      %p86 = por %p84, %p85
      %p87 = scmp.ne.s32.totalorder %s75, %s76
      %p88 = scmp.eq.s32.totalorder %s19, 1
      %p89 = por %p87, %p88
      %p91 = scmp.ne.s32.totalorder %s76, %s90
      %p92 = scmp.eq.s32.totalorder %s19, 0
      %p93 = por %p91, %p92
      %s95 = sadd.s32 %s94, 1
      %p98 = scmp.eq.s32.totalorder %s13, 1
      %p99 = scmp.ne.s32.totalorder %s94, %s96
      %p100 = scmp.eq.s32.totalorder %s13, 0
      %p101 = por %p99, %p100
      %p102 = scmp.ne.s32.totalorder %s94, %s96
      %p103 = scmp.eq.s32.totalorder %s18, 1
      %p104 = por %p102, %p103
      %p105 = scmp.ne.s32.totalorder %s96, %s97
      %p106 = scmp.eq.s32.totalorder %s18, 0
      %p107 = por %p105, %p106
      %p108 = scmp.ne.s32.totalorder %s96, %s97
      %p109 = scmp.eq.s32.totalorder %s19, 1
      %p110 = por %p108, %p109
      %p112 = scmp.ne.s32.totalorder %s97, %s111
      %p113 = scmp.eq.s32.totalorder %s19, 0
      %p114 = por %p112, %p113
      %s115 = ssub.s32 %s13, %s20
      %p116 = scmp.eq.s32.totalorder %s115, 0
      %s118 = sadd.s32 %s117, 1
      %s119 = scalar_select %p116, %s117, %s118
      %p122 = pneg %p116
      %p123 = scmp.eq.s32.totalorder %s13, 1
      %p124 = por %p122, %p123
      %p125 = scmp.ne.s32.totalorder %s117, %s120
      %p126 = scmp.eq.s32.totalorder %s13, 0
      %p127 = por %p125, %p126
      %p128 = scmp.ne.s32.totalorder %s117, %s120
      %p129 = scmp.eq.s32.totalorder %s18, 1
      %p130 = por %p128, %p129
      %p131 = scmp.ne.s32.totalorder %s120, %s121
      %p132 = scmp.eq.s32.totalorder %s18, 0
      %p133 = por %p131, %p132
      %p134 = scmp.ne.s32.totalorder %s120, %s121
      %p135 = scmp.eq.s32.totalorder %s19, 1
      %p136 = por %p134, %p135
      %p138 = scmp.ne.s32.totalorder %s121, %s137
      %p139 = scmp.eq.s32.totalorder %s19, 0
      %p140 = por %p138, %p139
      %p141 = scmp.le.s32.totalorder 1, %s13
      %p142 = scmp.lt.s32.totalorder %s13, 3
      %p143 = pnand %p141, %p142
      %p144 = pneg %p143
      // Predicated region
      $region9: #{multi_headed_self_attention.1} parent=5 // pred_check
        _
      $region10: #{multi_headed_self_attention.1} parent=5 // pred_check_branch
        %146 = sbr.rel (%p143) target = $region12
      $region11: #{multi_headed_self_attention.1} parent=5 // pred_region
        %s147 = ssub.s32 %s13, 1
        // Predicated region
        $region13: #{multi_headed_self_attention.1} parent=11 // pred_check
          %p148 = pneg %p86
        $region14: #{multi_headed_self_attention.1} parent=11 // pred_check_branch
          %150 = sbr.rel (%p148) target = $region16
        $region15: #{multi_headed_self_attention.1} parent=11 // pred_region
          _
        $region16: #{multi_headed_self_attention.1} parent=11 // pred_fallthru
          _
        // Predicated region
        $region17: #{multi_headed_self_attention.1} parent=11 // pred_check
          %p151 = pneg %p107
        $region18: #{multi_headed_self_attention.1} parent=11 // pred_check_branch
          %153 = sbr.rel (%p151) target = $region20
        $region19: #{multi_headed_self_attention.1} parent=11 // pred_region
          _
        $region20: #{multi_headed_self_attention.1} parent=11 // pred_fallthru
          _
      $region12: #{multi_headed_self_attention.1} parent=5 // pred_fallthru
        _
      %p154 = scmp.lt.s32.totalorder %s13, 2
      // Predicated region
      $region21: #{multi_headed_self_attention.1} parent=5 // pred_check
        %p155 = pneg %p154
      $region22: #{multi_headed_self_attention.1} parent=5 // pred_check_branch
        %157 = sbr.rel (%p155) target = $region24
      $region23: #{multi_headed_self_attention.1} parent=5 // pred_region
        // Predicated region
        $region25: #{multi_headed_self_attention.1} parent=23 // pred_check
          %p158 = pneg %p33
        $region26: #{multi_headed_self_attention.1} parent=23 // pred_check_branch
          %160 = sbr.rel (%p158) target = $region28
        $region27: #{multi_headed_self_attention.1} parent=23 // pred_region
          %p161 = scmp.lt.s32.totalorder %s13, 1
          %s162 = scalar_select %p161, %s13, 1
          %s163 = smul.addr %s162, 4
          %s164 = scalar_lea.vmem %s0, %s163
        $region28: #{multi_headed_self_attention.1} parent=23 // pred_fallthru
          _
        // Predicated region
        $region29: #{multi_headed_self_attention.1} parent=23 // pred_check
          %p165 = pneg %p59
        $region30: #{multi_headed_self_attention.1} parent=23 // pred_check_branch
          %167 = sbr.rel (%p165) target = $region32
        $region31: #{multi_headed_self_attention.1} parent=23 // pred_region
          %p168 = scmp.lt.s32.totalorder %s13, 1
          %s169 = scalar_select %p168, %s13, 1
          %s170 = scalar_lea.vmem %s1, %s169
        $region32: #{multi_headed_self_attention.1} parent=23 // pred_fallthru
          _
      $region24: #{multi_headed_self_attention.1} parent=5 // pred_fallthru
        _
      %p171 = scmp.le.s32.totalorder 1, %s13
      %p172 = scmp.lt.s32.totalorder %s13, 3
      %p173 = pnand %p171, %p172
      %p174 = pneg %p173
      // Predicated region
      $region33: #{multi_headed_self_attention.1} parent=5 // pred_check
        _
      $region34: #{multi_headed_self_attention.1} parent=5 // pred_check_branch
        %176 = sbr.rel (%p173) target = $region36
      $region35: #{multi_headed_self_attention.1} parent=5 // pred_region
        %s177 = ssub.s32 %s13, 1
        %p178 = scmp.lt.s32.totalorder %s18, 1
        %s179 = scalar_select %p178, %s18, 1
        %s180 = smul.addr %s179, 4
        %s181 = scalar_lea.vmem %s0, %s180
        %p182 = pneg %p39
        %p183 = pneg %p36
        %p184 = scmp.lt.s32.totalorder %s18, 1
        %s185 = scalar_select %p184, %s18, 1
        %s186 = scalar_lea.vmem %s1, %s185
        %p187 = pneg %p65
        %p188 = pneg %p62
        %p189 = pneg %p86
        %p190 = pneg %p83
        %p191 = pneg %p107
        %p192 = pneg %p104
        %p193 = pneg %p133
        %p194 = pneg %p130
        %s195 = sand.u32 %s120, 1
        %s196 = scalar_lea.sflag [#allocation3], %s195
        %s197 = sand.u32 %s120, 1
        %s198 = smul.addr %s197, 8
        %s199 = scalar_lea.vmem [#allocation2], %s198
        %p200 = scmp.lt.s32.totalorder %s18, 1
        %s201 = scalar_select %p200, %s18, 1
        %s202 = smul.addr %s201, 4
        %s203 = scalar_lea.vmem %s0, %s202
        %p204 = scmp.lt.s32.totalorder %s18, 1
        %s205 = scalar_select %p204, %s18, 1
        %s206 = scalar_lea.vmem %s1, %s205
        %v208 = vld [vmem:[%s203] sm:$0xf]
        %v209 = vld [vmem:[%s2] sm:$0xf]
        %v210 = vld [vmem:[%s2 + $0x4] sm:$0xf]
        %v211 = vld [vmem:[%s2 + $0x8] sm:$0xf]
        %v212 = vld [vmem:[%s2 + $0xc] sm:$0xf]
        %v213 = vld [vmem:[%s3] sm:$0x1]
        %v215 = vlaneseq
        %v216 = vshrl.u32 %v215, 7
        %v217 = vsub.s32 0, %v216
        %v218 = vrot.slane %v213, %v217
        %v224 = vunpack.c.l.b16 %v209
        %v225 = vunpack.c.l.b16 %v210
        %v226 = vunpack.c.l.b16 %v211
        %v227 = vunpack.c.l.b16 %v212
        %v228 = vpack.c.b16 %v225, %v224
        %v229 = vpack.c.b16 %v227, %v226
        %vm232 = vcmask 261120
        %v234 = vsel %vm232, %v208, 0
        %236 = vmatprep.subr.bf16.mxu0 0
        %237 = vmatpush1.bf16.msra.mxu0 %v228
        %238 = vmatprep.subr.bf16.mxu0 0
        %239 = vmatpush1.bf16.msra.mxu0 %v229
        %240 = vmatprep.subr.bf16.mxu0 0
        %241 = vmatpush1.bf16.msra.mxu0 0
        %242 = vmatprep.subr.bf16.mxu0 0
        %243 = vmatpush1.bf16.msra.mxu0 0
        %244 = vmatprep.subr.bf16.mxu0 0
        %245 = vmatpush1.bf16.msra.mxu0 0
        %246 = vmatprep.subr.bf16.mxu0 0
        %247 = vmatpush1.bf16.msra.mxu0 0
        %248 = vmatprep.subr.bf16.mxu0 0
        %249 = vmatpush1.bf16.msra.mxu0 0
        %250 = vmatprep.subr.bf16.mxu0 0
        %251 = vmatpush1.bf16.msra.mxu0 0
        %252 = vmatprep.subr.bf16.mxu0 0
        %253 = vmatpush1.bf16.msra.mxu0 0
        %254 = vmatprep.subr.bf16.mxu0 0
        %255 = vmatpush1.bf16.msra.mxu0 0
        %256 = vmatprep.subr.bf16.mxu0 0
        %257 = vmatpush1.bf16.msra.mxu0 0
        %258 = vmatprep.subr.bf16.mxu0 0
        %259 = vmatpush1.bf16.msra.mxu0 0
        %260 = vmatprep.subr.bf16.mxu0 0
        %261 = vmatpush1.bf16.msra.mxu0 0
        %262 = vmatprep.subr.bf16.mxu0 0
        %263 = vmatpush1.bf16.msra.mxu0 0
        %264 = vmatprep.subr.bf16.mxu0 0
        %265 = vmatpush1.bf16.msra.mxu0 0
        %266 = vmatprep.subr.bf16.mxu0 0
        %267 = vmatpush1.bf16.msra.mxu0 0
        %268 = vmatprep.mubr.bf16.mxu0 0
        %269 = vmatmul.mubr.bf16.gmra.mrb[0].mxu0 %v234
        %v270 = vpop.f32.mrb[0].mxu0
        %v271 = vadd.f32 %v218, %v270
        %v272 = vpop.f32.mrb[0].mxu0
        %v273 = vpop.f32.mrb[0].mxu0
        %v274 = vpop.f32.mrb[0].mxu0
        %275 = vdwg.mxu0
        %v276 = vpack.c.bf16 %v271, %v271
        %v277 = vld [vmem:[%s206] sm:$0x1]
        %v278 = vsub.f32 1.0, %v277
        %v279 = vmul.f32 %v278, 10000.0
        %281 = vrot.lane.b32.xlu0 %v276, 96
        %v282 = vpop.permute.xlu0 %281
        %vm283 = vcmask 64512
        %v285 = vsel %vm283, %v276, 0
        %v288 = vsel %vm283, %v282, 0
        %290 = vmatprep.subr.bf16.mxu0 0
        %291 = vmatpush1.bf16.xpose.msra.mxu0 %v288
        %292 = vmatprep.subr.bf16.mxu0 0
        %293 = vmatpush1.bf16.xpose.msra.mxu0 0
        %294 = vmatprep.subr.bf16.mxu0 0
        %295 = vmatpush1.bf16.xpose.msra.mxu0 0
        %296 = vmatprep.subr.bf16.mxu0 0
        %297 = vmatpush1.bf16.xpose.msra.mxu0 0
        %298 = vmatprep.subr.bf16.mxu0 0
        %299 = vmatpush1.bf16.xpose.msra.mxu0 0
        %300 = vmatprep.subr.bf16.mxu0 0
        %301 = vmatpush1.bf16.xpose.msra.mxu0 0
        %302 = vmatprep.subr.bf16.mxu0 0
        %303 = vmatpush1.bf16.xpose.msra.mxu0 0
        %304 = vmatprep.subr.bf16.mxu0 0
        %305 = vmatpush1.bf16.xpose.msra.mxu0 0
        %306 = vmatprep.subr.bf16.mxu0 0
        %307 = vmatpush1.bf16.xpose.msra.mxu0 0
        %308 = vmatprep.subr.bf16.mxu0 0
        %309 = vmatpush1.bf16.xpose.msra.mxu0 0
        %310 = vmatprep.subr.bf16.mxu0 0
        %311 = vmatpush1.bf16.xpose.msra.mxu0 0
        %312 = vmatprep.subr.bf16.mxu0 0
        %313 = vmatpush1.bf16.xpose.msra.mxu0 0
        %314 = vmatprep.subr.bf16.mxu0 0
        %315 = vmatpush1.bf16.xpose.msra.mxu0 0
        %316 = vmatprep.subr.bf16.mxu0 0
        %317 = vmatpush1.bf16.xpose.msra.mxu0 0
        %318 = vmatprep.subr.bf16.mxu0 0
        %319 = vmatpush1.bf16.xpose.msra.mxu0 0
        %320 = vmatprep.subr.bf16.mxu0 0
        %321 = vmatpush1.bf16.xpose.msra.mxu0 0
        %322 = vmatprep.mubr.bf16.mxu0 0
        %323 = vmatmul.mubr.bf16.gmra.mrb[0].mxu0 %v285
        %v324 = vpop.f32.mrb[0].mxu0
        %v325 = vadd.f32 0.0, %v324
        %v326 = vpop.f32.mrb[0].mxu0
        %v327 = vpop.f32.mrb[0].mxu0
        %v328 = vpop.f32.mrb[0].mxu0
        %329 = vdwg.mxu0
        %v330 = vmul.f32 %v325, 0.35355338
        %v332 = vlaneseq
        %v333 = vshrl.u32 %v332, 7
        %v334 = vsub.s32 0, %v333
        %v335 = vrot.slane %v279, %v334
        %v337 = vsub.f32 %v330, %v335
        %v338 = vsel %vm283, %v337, -inf
        %339 = vmax.xlane.f32.xlu0 %v338
        %v340 = vpop.xlane.xlu0 %339
        %v341 = vsub.f32 %v337, %v340
        %v342 = vmul.f32 %v341, 1.442695
        %v343 = vpow.pop %v342
        %v344 = vsel %vm283, %v343, 0.0
        %345 = vadd.xlane.f32.xlu0 %v344
        %v346 = vpop.xlane.xlu0 %345
        %v347 = vrcp.pop %v346
        %v348 = vmul.f32 %v343, %v347
        %v349 = vpack.c.bf16 %v348, %v348
        %350 = vrot.lane.b32.xlu0 %v276, 64
        %v351 = vpop.permute.xlu0 %350
        %v353 = vsel %vm283, %v349, 0
        %vm355 = vcmask 1043456
        %v357 = vsel %vm355, %v351, 0
        %359 = vmatprep.subr.bf16.mxu0 0
        %360 = vmatpush1.bf16.msra.mxu0 %v357
        %361 = vmatprep.subr.bf16.mxu0 0
        %362 = vmatpush1.bf16.msra.mxu0 0
        %363 = vmatprep.subr.bf16.mxu0 0
        %364 = vmatpush1.bf16.msra.mxu0 0
        %365 = vmatprep.subr.bf16.mxu0 0
        %366 = vmatpush1.bf16.msra.mxu0 0
        %367 = vmatprep.subr.bf16.mxu0 0
        %368 = vmatpush1.bf16.msra.mxu0 0
        %369 = vmatprep.subr.bf16.mxu0 0
        %370 = vmatpush1.bf16.msra.mxu0 0
        %371 = vmatprep.subr.bf16.mxu0 0
        %372 = vmatpush1.bf16.msra.mxu0 0
        %373 = vmatprep.subr.bf16.mxu0 0
        %374 = vmatpush1.bf16.msra.mxu0 0
        %375 = vmatprep.subr.bf16.mxu0 0
        %376 = vmatpush1.bf16.msra.mxu0 0
        %377 = vmatprep.subr.bf16.mxu0 0
        %378 = vmatpush1.bf16.msra.mxu0 0
        %379 = vmatprep.subr.bf16.mxu0 0
        %380 = vmatpush1.bf16.msra.mxu0 0
        %381 = vmatprep.subr.bf16.mxu0 0
        %382 = vmatpush1.bf16.msra.mxu0 0
        %383 = vmatprep.subr.bf16.mxu0 0
        %384 = vmatpush1.bf16.msra.mxu0 0
        %385 = vmatprep.subr.bf16.mxu0 0
        %386 = vmatpush1.bf16.msra.mxu0 0
        %387 = vmatprep.subr.bf16.mxu0 0
        %388 = vmatpush1.bf16.msra.mxu0 0
        %389 = vmatprep.subr.bf16.mxu0 0
        %390 = vmatpush1.bf16.msra.mxu0 0
        %391 = vmatprep.mubr.bf16.mxu0 0
        %392 = vmatmul.mubr.bf16.gmra.mrb[0].mxu0 %v353
        %v393 = vpop.f32.mrb[0].mxu0
        %v394 = vadd.f32 0.0, %v393
        %v395 = vpop.f32.mrb[0].mxu0
        %v396 = vpop.f32.mrb[0].mxu0
        %v397 = vpop.f32.mrb[0].mxu0
        %398 = vdwg.mxu0
        %399 = vrot.lane.b32.xlu0 %v276, 120
        %v400 = vpop.permute.xlu0 %399
        %401 = vrot.lane.b32.xlu0 %v276, 88
        %v402 = vpop.permute.xlu0 %401
        %v404 = vsel %vm283, %v400, 0
        %v407 = vsel %vm283, %v402, 0
        %409 = vmatprep.subr.bf16.mxu0 0
        %410 = vmatpush1.bf16.xpose.msra.mxu0 %v407
        %411 = vmatprep.subr.bf16.mxu0 0
        %412 = vmatpush1.bf16.xpose.msra.mxu0 0
        %413 = vmatprep.subr.bf16.mxu0 0
        %414 = vmatpush1.bf16.xpose.msra.mxu0 0
        %415 = vmatprep.subr.bf16.mxu0 0
        %416 = vmatpush1.bf16.xpose.msra.mxu0 0
        %417 = vmatprep.subr.bf16.mxu0 0
        %418 = vmatpush1.bf16.xpose.msra.mxu0 0
        %419 = vmatprep.subr.bf16.mxu0 0
        %420 = vmatpush1.bf16.xpose.msra.mxu0 0
        %421 = vmatprep.subr.bf16.mxu0 0
        %422 = vmatpush1.bf16.xpose.msra.mxu0 0
        %423 = vmatprep.subr.bf16.mxu0 0
        %424 = vmatpush1.bf16.xpose.msra.mxu0 0
        %425 = vmatprep.subr.bf16.mxu0 0
        %426 = vmatpush1.bf16.xpose.msra.mxu0 0
        %427 = vmatprep.subr.bf16.mxu0 0
        %428 = vmatpush1.bf16.xpose.msra.mxu0 0
        %429 = vmatprep.subr.bf16.mxu0 0
        %430 = vmatpush1.bf16.xpose.msra.mxu0 0
        %431 = vmatprep.subr.bf16.mxu0 0
        %432 = vmatpush1.bf16.xpose.msra.mxu0 0
        %433 = vmatprep.subr.bf16.mxu0 0
        %434 = vmatpush1.bf16.xpose.msra.mxu0 0
        %435 = vmatprep.subr.bf16.mxu0 0
        %436 = vmatpush1.bf16.xpose.msra.mxu0 0
        %437 = vmatprep.subr.bf16.mxu0 0
        %438 = vmatpush1.bf16.xpose.msra.mxu0 0
        %439 = vmatprep.subr.bf16.mxu0 0
        %440 = vmatpush1.bf16.xpose.msra.mxu0 0
        %441 = vmatprep.mubr.bf16.mxu0 0
        %442 = vmatmul.mubr.bf16.gmra.mrb[0].mxu0 %v404
        %v443 = vpop.f32.mrb[0].mxu0
        %v444 = vadd.f32 0.0, %v443
        %v445 = vpop.f32.mrb[0].mxu0
        %v446 = vpop.f32.mrb[0].mxu0
        %v447 = vpop.f32.mrb[0].mxu0
        %448 = vdwg.mxu0
        %v449 = vmul.f32 %v444, 0.35355338
        %v450 = vsub.f32 %v449, %v335
        %v451 = vsel %vm283, %v450, -inf
        %452 = vmax.xlane.f32.xlu0 %v451
        %v453 = vpop.xlane.xlu0 %452
        %v454 = vsub.f32 %v450, %v453
        %v455 = vmul.f32 %v454, 1.442695
        %v456 = vpow.pop %v455
        %v457 = vsel %vm283, %v456, 0.0
        %458 = vadd.xlane.f32.xlu0 %v457
        %v459 = vpop.xlane.xlu0 %458
        %v460 = vrcp.pop %v459
        %v461 = vmul.f32 %v456, %v460
        %v462 = vpack.c.bf16 %v461, %v461
        %463 = vrot.lane.b32.xlu0 %v276, 56
        %v464 = vpop.permute.xlu0 %463
        %v466 = vsel %vm283, %v462, 0
        %v469 = vsel %vm355, %v464, 0
        %471 = vmatprep.subr.bf16.mxu0 0
        %472 = vmatpush1.bf16.msra.mxu0 %v469
        %473 = vmatprep.subr.bf16.mxu0 0
        %474 = vmatpush1.bf16.msra.mxu0 0
        %475 = vmatprep.subr.bf16.mxu0 0
        %476 = vmatpush1.bf16.msra.mxu0 0
        %477 = vmatprep.subr.bf16.mxu0 0
        %478 = vmatpush1.bf16.msra.mxu0 0
        %479 = vmatprep.subr.bf16.mxu0 0
        %480 = vmatpush1.bf16.msra.mxu0 0
        %481 = vmatprep.subr.bf16.mxu0 0
        %482 = vmatpush1.bf16.msra.mxu0 0
        %483 = vmatprep.subr.bf16.mxu0 0
        %484 = vmatpush1.bf16.msra.mxu0 0
        %485 = vmatprep.subr.bf16.mxu0 0
        %486 = vmatpush1.bf16.msra.mxu0 0
        %487 = vmatprep.subr.bf16.mxu0 0
        %488 = vmatpush1.bf16.msra.mxu0 0
        %489 = vmatprep.subr.bf16.mxu0 0
        %490 = vmatpush1.bf16.msra.mxu0 0
        %491 = vmatprep.subr.bf16.mxu0 0
        %492 = vmatpush1.bf16.msra.mxu0 0
        %493 = vmatprep.subr.bf16.mxu0 0
        %494 = vmatpush1.bf16.msra.mxu0 0
        %495 = vmatprep.subr.bf16.mxu0 0
        %496 = vmatpush1.bf16.msra.mxu0 0
        %497 = vmatprep.subr.bf16.mxu0 0
        %498 = vmatpush1.bf16.msra.mxu0 0
        %499 = vmatprep.subr.bf16.mxu0 0
        %500 = vmatpush1.bf16.msra.mxu0 0
        %501 = vmatprep.subr.bf16.mxu0 0
        %502 = vmatpush1.bf16.msra.mxu0 0
        %503 = vmatprep.mubr.bf16.mxu0 0
        %504 = vmatmul.mubr.bf16.gmra.mrb[0].mxu0 %v466
        %v505 = vpop.f32.mrb[0].mxu0
        %v506 = vadd.f32 0.0, %v505
        %v507 = vpop.f32.mrb[0].mxu0
        %v508 = vpop.f32.mrb[0].mxu0
        %v509 = vpop.f32.mrb[0].mxu0
        %510 = vdwg.mxu0
        %511 = vrot.lane.b32.xlu0 %v276, 112
        %v512 = vpop.permute.xlu0 %511
        %513 = vrot.lane.b32.xlu0 %v276, 80
        %v514 = vpop.permute.xlu0 %513
        %v516 = vsel %vm283, %v512, 0
        %v519 = vsel %vm283, %v514, 0
        %521 = vmatprep.subr.bf16.mxu0 0
        %522 = vmatpush1.bf16.xpose.msra.mxu0 %v519
        %523 = vmatprep.subr.bf16.mxu0 0
        %524 = vmatpush1.bf16.xpose.msra.mxu0 0
        %525 = vmatprep.subr.bf16.mxu0 0
        %526 = vmatpush1.bf16.xpose.msra.mxu0 0
        %527 = vmatprep.subr.bf16.mxu0 0
        %528 = vmatpush1.bf16.xpose.msra.mxu0 0
        %529 = vmatprep.subr.bf16.mxu0 0
        %530 = vmatpush1.bf16.xpose.msra.mxu0 0
        %531 = vmatprep.subr.bf16.mxu0 0
        %532 = vmatpush1.bf16.xpose.msra.mxu0 0
        %533 = vmatprep.subr.bf16.mxu0 0
        %534 = vmatpush1.bf16.xpose.msra.mxu0 0
        %535 = vmatprep.subr.bf16.mxu0 0
        %536 = vmatpush1.bf16.xpose.msra.mxu0 0
        %537 = vmatprep.subr.bf16.mxu0 0
        %538 = vmatpush1.bf16.xpose.msra.mxu0 0
        %539 = vmatprep.subr.bf16.mxu0 0
        %540 = vmatpush1.bf16.xpose.msra.mxu0 0
        %541 = vmatprep.subr.bf16.mxu0 0
        %542 = vmatpush1.bf16.xpose.msra.mxu0 0
        %543 = vmatprep.subr.bf16.mxu0 0
        %544 = vmatpush1.bf16.xpose.msra.mxu0 0
        %545 = vmatprep.subr.bf16.mxu0 0
        %546 = vmatpush1.bf16.xpose.msra.mxu0 0
        %547 = vmatprep.subr.bf16.mxu0 0
        %548 = vmatpush1.bf16.xpose.msra.mxu0 0
        %549 = vmatprep.subr.bf16.mxu0 0
        %550 = vmatpush1.bf16.xpose.msra.mxu0 0
        %551 = vmatprep.subr.bf16.mxu0 0
        %552 = vmatpush1.bf16.xpose.msra.mxu0 0
        %553 = vmatprep.mubr.bf16.mxu0 0
        %554 = vmatmul.mubr.bf16.gmra.mrb[0].mxu0 %v516
        %v555 = vpop.f32.mrb[0].mxu0
        %v556 = vadd.f32 0.0, %v555
        %v557 = vpop.f32.mrb[0].mxu0
        %v558 = vpop.f32.mrb[0].mxu0
        %v559 = vpop.f32.mrb[0].mxu0
        %560 = vdwg.mxu0
        %v561 = vmul.f32 %v556, 0.35355338
        %v562 = vsub.f32 %v561, %v335
        %v563 = vsel %vm283, %v562, -inf
        %564 = vmax.xlane.f32.xlu0 %v563
        %v565 = vpop.xlane.xlu0 %564
        %v566 = vsub.f32 %v562, %v565
        %v567 = vmul.f32 %v566, 1.442695
        %v568 = vpow.pop %v567
        %v569 = vsel %vm283, %v568, 0.0
        %570 = vadd.xlane.f32.xlu0 %v569
        %v571 = vpop.xlane.xlu0 %570
        %v572 = vrcp.pop %v571
        %v573 = vmul.f32 %v568, %v572
        %v574 = vpack.c.bf16 %v573, %v573
        %575 = vrot.lane.b32.xlu0 %v276, 48
        %v576 = vpop.permute.xlu0 %575
        %v578 = vsel %vm283, %v574, 0
        %v581 = vsel %vm355, %v576, 0
        %583 = vmatprep.subr.bf16.mxu0 0
        %584 = vmatpush1.bf16.msra.mxu0 %v581
        %585 = vmatprep.subr.bf16.mxu0 0
        %586 = vmatpush1.bf16.msra.mxu0 0
        %587 = vmatprep.subr.bf16.mxu0 0
        %588 = vmatpush1.bf16.msra.mxu0 0
        %589 = vmatprep.subr.bf16.mxu0 0
        %590 = vmatpush1.bf16.msra.mxu0 0
        %591 = vmatprep.subr.bf16.mxu0 0
        %592 = vmatpush1.bf16.msra.mxu0 0
        %593 = vmatprep.subr.bf16.mxu0 0
        %594 = vmatpush1.bf16.msra.mxu0 0
        %595 = vmatprep.subr.bf16.mxu0 0
        %596 = vmatpush1.bf16.msra.mxu0 0
        %597 = vmatprep.subr.bf16.mxu0 0
        %598 = vmatpush1.bf16.msra.mxu0 0
        %599 = vmatprep.subr.bf16.mxu0 0
        %600 = vmatpush1.bf16.msra.mxu0 0
        %601 = vmatprep.subr.bf16.mxu0 0
        %602 = vmatpush1.bf16.msra.mxu0 0
        %603 = vmatprep.subr.bf16.mxu0 0
        %604 = vmatpush1.bf16.msra.mxu0 0
        %605 = vmatprep.subr.bf16.mxu0 0
        %606 = vmatpush1.bf16.msra.mxu0 0
        %607 = vmatprep.subr.bf16.mxu0 0
        %608 = vmatpush1.bf16.msra.mxu0 0
        %609 = vmatprep.subr.bf16.mxu0 0
        %610 = vmatpush1.bf16.msra.mxu0 0
        %611 = vmatprep.subr.bf16.mxu0 0
        %612 = vmatpush1.bf16.msra.mxu0 0
        %613 = vmatprep.subr.bf16.mxu0 0
        %614 = vmatpush1.bf16.msra.mxu0 0
        %615 = vmatprep.mubr.bf16.mxu0 0
        %616 = vmatmul.mubr.bf16.gmra.mrb[0].mxu0 %v578
        %v617 = vpop.f32.mrb[0].mxu0
        %v618 = vadd.f32 0.0, %v617
        %v619 = vpop.f32.mrb[0].mxu0
        %v620 = vpop.f32.mrb[0].mxu0
        %v621 = vpop.f32.mrb[0].mxu0
        %622 = vdwg.mxu0
        %623 = vrot.lane.b32.xlu0 %v276, 104
        %v624 = vpop.permute.xlu0 %623
        %625 = vrot.lane.b32.xlu0 %v276, 72
        %v626 = vpop.permute.xlu0 %625
        %v628 = vsel %vm283, %v624, 0
        %v631 = vsel %vm283, %v626, 0
        %633 = vmatprep.subr.bf16.mxu0 0
        %634 = vmatpush1.bf16.xpose.msra.mxu0 %v631
        %635 = vmatprep.subr.bf16.mxu0 0
        %636 = vmatpush1.bf16.xpose.msra.mxu0 0
        %637 = vmatprep.subr.bf16.mxu0 0
        %638 = vmatpush1.bf16.xpose.msra.mxu0 0
        %639 = vmatprep.subr.bf16.mxu0 0
        %640 = vmatpush1.bf16.xpose.msra.mxu0 0
        %641 = vmatprep.subr.bf16.mxu0 0
        %642 = vmatpush1.bf16.xpose.msra.mxu0 0
        %643 = vmatprep.subr.bf16.mxu0 0
        %644 = vmatpush1.bf16.xpose.msra.mxu0 0
        %645 = vmatprep.subr.bf16.mxu0 0
        %646 = vmatpush1.bf16.xpose.msra.mxu0 0
        %647 = vmatprep.subr.bf16.mxu0 0
        %648 = vmatpush1.bf16.xpose.msra.mxu0 0
        %649 = vmatprep.subr.bf16.mxu0 0
        %650 = vmatpush1.bf16.xpose.msra.mxu0 0
        %651 = vmatprep.subr.bf16.mxu0 0
        %652 = vmatpush1.bf16.xpose.msra.mxu0 0
        %653 = vmatprep.subr.bf16.mxu0 0
        %654 = vmatpush1.bf16.xpose.msra.mxu0 0
        %655 = vmatprep.subr.bf16.mxu0 0
        %656 = vmatpush1.bf16.xpose.msra.mxu0 0
        %657 = vmatprep.subr.bf16.mxu0 0
        %658 = vmatpush1.bf16.xpose.msra.mxu0 0
        %659 = vmatprep.subr.bf16.mxu0 0
        %660 = vmatpush1.bf16.xpose.msra.mxu0 0
        %661 = vmatprep.subr.bf16.mxu0 0
        %662 = vmatpush1.bf16.xpose.msra.mxu0 0
        %663 = vmatprep.subr.bf16.mxu0 0
        %664 = vmatpush1.bf16.xpose.msra.mxu0 0
        %665 = vmatprep.mubr.bf16.mxu0 0
        %666 = vmatmul.mubr.bf16.gmra.mrb[0].mxu0 %v628
        %v667 = vpop.f32.mrb[0].mxu0
        %v668 = vadd.f32 0.0, %v667
        %v669 = vpop.f32.mrb[0].mxu0
        %v670 = vpop.f32.mrb[0].mxu0
        %v671 = vpop.f32.mrb[0].mxu0
        %672 = vdwg.mxu0
        %v673 = vmul.f32 %v668, 0.35355338
        %v674 = vsub.f32 %v673, %v335
        %v675 = vsel %vm283, %v674, -inf
        %676 = vmax.xlane.f32.xlu0 %v675
        %v677 = vpop.xlane.xlu0 %676
        %v678 = vsub.f32 %v674, %v677
        %v679 = vmul.f32 %v678, 1.442695
        %v680 = vpow.pop %v679
        %v681 = vsel %vm283, %v680, 0.0
        %682 = vadd.xlane.f32.xlu0 %v681
        %v683 = vpop.xlane.xlu0 %682
        %v684 = vrcp.pop %v683
        %v685 = vmul.f32 %v680, %v684
        %v686 = vpack.c.bf16 %v685, %v685
        %687 = vrot.lane.b32.xlu0 %v276, 40
        %v688 = vpop.permute.xlu0 %687
        %v690 = vsel %vm283, %v686, 0
        %v693 = vsel %vm355, %v688, 0
        %695 = vmatprep.subr.bf16.mxu0 0
        %696 = vmatpush1.bf16.msra.mxu0 %v693
        %697 = vmatprep.subr.bf16.mxu0 0
        %698 = vmatpush1.bf16.msra.mxu0 0
        %699 = vmatprep.subr.bf16.mxu0 0
        %700 = vmatpush1.bf16.msra.mxu0 0
        %701 = vmatprep.subr.bf16.mxu0 0
        %702 = vmatpush1.bf16.msra.mxu0 0
        %703 = vmatprep.subr.bf16.mxu0 0
        %704 = vmatpush1.bf16.msra.mxu0 0
        %705 = vmatprep.subr.bf16.mxu0 0
        %706 = vmatpush1.bf16.msra.mxu0 0
        %707 = vmatprep.subr.bf16.mxu0 0
        %708 = vmatpush1.bf16.msra.mxu0 0
        %709 = vmatprep.subr.bf16.mxu0 0
        %710 = vmatpush1.bf16.msra.mxu0 0
        %711 = vmatprep.subr.bf16.mxu0 0
        %712 = vmatpush1.bf16.msra.mxu0 0
        %713 = vmatprep.subr.bf16.mxu0 0
        %714 = vmatpush1.bf16.msra.mxu0 0
        %715 = vmatprep.subr.bf16.mxu0 0
        %716 = vmatpush1.bf16.msra.mxu0 0
        %717 = vmatprep.subr.bf16.mxu0 0
        %718 = vmatpush1.bf16.msra.mxu0 0
        %719 = vmatprep.subr.bf16.mxu0 0
        %720 = vmatpush1.bf16.msra.mxu0 0
        %721 = vmatprep.subr.bf16.mxu0 0
        %722 = vmatpush1.bf16.msra.mxu0 0
        %723 = vmatprep.subr.bf16.mxu0 0
        %724 = vmatpush1.bf16.msra.mxu0 0
        %725 = vmatprep.subr.bf16.mxu0 0
        %726 = vmatpush1.bf16.msra.mxu0 0
        %727 = vmatprep.mubr.bf16.mxu0 0
        %728 = vmatmul.mubr.bf16.gmra.mrb[0].mxu0 %v690
        %v729 = vpop.f32.mrb[0].mxu0
        %v730 = vadd.f32 0.0, %v729
        %v731 = vpop.f32.mrb[0].mxu0
        %v732 = vpop.f32.mrb[0].mxu0
        %v733 = vpop.f32.mrb[0].mxu0
        %734 = vdwg.mxu0
        %736 = vrot.lane.b32.xlu0 %v506, 8
        %v737 = vpop.permute.xlu0 %736
        %740 = vrot.lane.b32.xlu0 %v618, 16
        %v741 = vpop.permute.xlu0 %740
        %744 = vrot.lane.b32.xlu0 %v730, 24
        %v745 = vpop.permute.xlu0 %744
        %v747 = vsel %vm283, %v394, %v737
        %vm748 = vcmask 130048
        %v749 = vsel %vm748, %v747, %v741
        %vm750 = vcmask 195584
        %v751 = vsel %vm750, %v749, %v745
        %752 = vst.msk [vmem:[%s199] sm:$0xff] %vm232, %v751
        %s753 = sand.u32 %s120, 1
        %s754 = scalar_lea.sflag [#allocation3], %s753
        %s755 = sand.u32 %s120, 1
        %s756 = smul.addr %s755, 8
        %s757 = scalar_lea.vmem [#allocation2], %s756
        // Predicated region
        $region37: #{multi_headed_self_attention.1} parent=35 // pred_check
          %p758 = pneg %p130
        $region38: #{multi_headed_self_attention.1} parent=35 // pred_check_branch
          %760 = sbr.rel (%p758) target = $region40
        $region39: #{multi_headed_self_attention.1} parent=35 // pred_region
          %s762 = ssub.s32 128, 128
          %763 = vsyncadd %s754, %s762
          %s764 = smul.addr %s18, 128
          %s765 = scalar_lea.hbm %s4, %s764
          %s767 = sshll.u32 %s757, 4
          %s768 = int_to_ptr.vmem [resolvable:$true] %s767
          %770 = dma.vmem_to_hbm [thread:$0]  %s768, 128, %s765, %s754
        $region40: #{multi_headed_self_attention.1} parent=35 // pred_fallthru
          _
      $region36: #{multi_headed_self_attention.1} parent=5 // pred_fallthru
        _
      %p771 = scmp.le.s32.totalorder 2, %s13
      // Predicated region
      $region41: #{multi_headed_self_attention.1} parent=5 // pred_check
        %p772 = pneg %p771
      $region42: #{multi_headed_self_attention.1} parent=5 // pred_check_branch
        %774 = sbr.rel (%p772) target = $region44
      $region43: #{multi_headed_self_attention.1} parent=5 // pred_region
        %s775 = ssub.s32 %s13, 2
        // Predicated region
        $region45: #{multi_headed_self_attention.1} parent=43 // pred_check
          %p776 = pneg %p136
        $region46: #{multi_headed_self_attention.1} parent=43 // pred_check_branch
          %778 = sbr.rel (%p776) target = $region48
        $region47: #{multi_headed_self_attention.1} parent=43 // pred_region
          %s779 = sand.u32 %s121, 1
          %s780 = scalar_lea.sflag [#allocation3], %s779
          %s781 = sand.u32 %s121, 1
          %s782 = smul.addr %s781, 8
          %s783 = scalar_lea.vmem [#allocation2], %s782
          %784 = dma.done %s780, 128
        $region48: #{multi_headed_self_attention.1} parent=43 // pred_fallthru
          _
      $region44: #{multi_headed_self_attention.1} parent=5 // pred_fallthru
        _
    $region6: #{multi_headed_self_attention.1} parent=1 // loop_footer
      %s17 = sadd.s32 1, %s13
    $region7: #{multi_headed_self_attention.1} parent=1 // loop_footer_branch
      %12 = sbr.rel target = $region3
    $region8: #{multi_headed_self_attention.1} parent=1 // loop_exit
      _
    %785 = vsyncpa [#allocation3], 1
    %s786 = scalar_lea.sflag [#allocation3], 1
    %787 = vsyncpa %s786, 1

</llo_original>
